<compile_context>
chip_gen: v5e
topology: v5e:2x2
jax: 0.10.0
libtpu: 0.0.40
codegen_flags: <defaults>
</compile_context>

<pallas_src>
import functools

import jax
import jax.numpy as jnp
from jax.experimental import pallas as pl
from jax.experimental.pallas import tpu as pltpu


# ----------------------------------------------------------------------------
# Kernel
# ----------------------------------------------------------------------------

def _resnet_block_kernel(x_ref, w1_ref, w2_ref, params_ref, *rest, use_skip_conv):
    """Fused ResNetBlockUnMasked forward for one (NB, L, C_in) batch tile.

    x_ref:      (NB, L, C_in)      channel-last activation tile
    w1_ref:     (3*C_in,  C_out)   conv1 weights, matmul-ready ([k=0; k=1; k=2] row blocks)
    w2_ref:     (3*C_out, C_out)   conv2 weights, matmul-ready
    params_ref: (4, C_out)         rows = [bias1, bias2, alpha1, alpha2]
    wskip_ref:  (3*C_in, C_out)    only present when use_skip_conv
    o_ref:      (NB, L, C_out)
    """
    if use_skip_conv:
        wskip_ref, o_ref = rest
    else:
        (o_ref,) = rest

    x = x_ref[...].astype(jnp.float32)              # (NB, L, Cin)
    nb, L, _ = x.shape

    params = params_ref[...].astype(jnp.float32)    # (4, Cout)
    b1 = params[0:1, :]                             # (1, Cout) -> broadcasts over (NB, L, Cout)
    b2 = params[1:2, :]
    a1 = params[2:3, :]
    a2 = params[3:4, :]

    def shift3(v):
        # (NB, L, C) -> (NB, L, 3C): [v[l-1] | v[l] | v[l+1]] with zero padding at the edges
        # (== Conv1d padding=1 semantics).
        zrow = jnp.zeros((nb, 1, v.shape[-1]), dtype=v.dtype)
        prev = jnp.concatenate([zrow, v[:, :-1, :]], axis=1)
        nxt = jnp.concatenate([v[:, 1:, :], zrow], axis=1)
        return jnp.concatenate([prev, v, nxt], axis=-1)

    def conv3(v3, w_ref):
        # (NB, L, 3C) @ (3C, Cout) on the MXU, f32 accumulation.
        w = w_ref[...].astype(jnp.float32)
        flat = v3.reshape(nb * L, v3.shape[-1])
        out = jnp.dot(flat, w, preferred_element_type=jnp.float32)
        return out.reshape(nb, L, w.shape[-1])

    def prelu(h, a):
        return jnp.where(h >= 0.0, h, a * h)

    x3 = shift3(x)
    h1 = prelu(conv3(x3, w1_ref) + b1, a1)          # act1(conv1(x))
    h2 = conv3(shift3(h1), w2_ref) + b2             # conv2(...)
    skip = conv3(x3, wskip_ref) if use_skip_conv else x
    o_ref[...] = prelu(h2 + skip, a2).astype(o_ref.dtype)


# ----------------------------------------------------------------------------
# Wrapper
# ----------------------------------------------------------------------------

def _pack_conv_weight(w):
    """PyTorch Conv1d weight (C_out, C_in, 3) -> matmul-ready (3*C_in, C_out).

    Row index = k*C_in + ci, matching the [prev | cur | next] channel stack built in-kernel.
    """
    c_out, c_in, k = w.shape
    assert k == 3
    return jnp.transpose(w, (2, 1, 0)).reshape(3 * c_in, c_out)


def resnet_block_unmasked_forward(x, conv1_w, conv1_b, conv2_w, conv2_b,
                                  alpha1, alpha2, conv_skip_w=None,
                                  *, stride=1, batch_block=8):
    """Forward pass of ResNetBlockUnMasked (batch_norm=False).

    x:           (N, C_in, L)   -- PyTorch Conv1d layout
    conv1_w:     (C_out, C_in, 3),  conv1_b: (C_out,)
    conv2_w:     (C_out, C_out, 3), conv2_b: (C_out,)
    alpha1/2:    (C_out,)       -- per-channel PReLU slopes
    conv_skip_w: (C_out, C_in, 3) or None (None => identity skip, requires C_in == C_out)

    returns y: (N, C_out, L)
    """
    if stride != 1:
        # TODO(synk): stride > 1 (downsampling conv1 / conv_skip) not implemented in the kernel.
        raise NotImplementedError("stride > 1 not supported by this Pallas kernel")

    N, c_in, L = x.shape
    c_out = conv1_w.shape[0]
    use_skip_conv = conv_skip_w is not None
    if not use_skip_conv:
        assert c_in == c_out, "identity skip requires inp_cha == out_cha"

    # Channel-last layout: length on sublanes, channels on lanes (layout plumbing only).
    x_cl = jnp.transpose(x, (0, 2, 1))                                  # (N, L, C_in)

    # Pack weights matmul-ready; pack the four per-channel vectors into one slab (one DMA).
    w1p = _pack_conv_weight(conv1_w)                                    # (3*C_in,  C_out)
    w2p = _pack_conv_weight(conv2_w)                                    # (3*C_out, C_out)
    params = jnp.stack([conv1_b, conv2_b, alpha1, alpha2], axis=0)      # (4, C_out)

    # Batch tiling: keep (nb, L, C) tiles well inside VMEM and give the pipeline a grid to overlap.
    nb = max(1, min(batch_block, N))
    n_pad = -(-N // nb) * nb
    if n_pad != N:
        x_cl = jnp.pad(x_cl, ((0, n_pad - N), (0, 0), (0, 0)))
    grid = (n_pad // nb,)

    kernel = functools.partial(_resnet_block_kernel, use_skip_conv=use_skip_conv)

    in_specs = [
        pl.BlockSpec((nb, L, c_in), lambda n: (n, 0, 0)),
        pl.BlockSpec((3 * c_in, c_out), lambda n: (0, 0)),
        pl.BlockSpec((3 * c_out, c_out), lambda n: (0, 0)),
        pl.BlockSpec((4, c_out), lambda n: (0, 0)),
    ]
    args = [x_cl, w1p, w2p, params]
    if use_skip_conv:
        in_specs.append(pl.BlockSpec((3 * c_in, c_out), lambda n: (0, 0)))
        args.append(_pack_conv_weight(conv_skip_w))

    y_cl = pl.pallas_call(
        kernel,
        grid=grid,
        in_specs=in_specs,
        out_specs=pl.BlockSpec((nb, L, c_out), lambda n: (n, 0, 0)),
        out_shape=jax.ShapeDtypeStruct((n_pad, L, c_out), x.dtype),
        compiler_params=pltpu.CompilerParams(dimension_semantics=("parallel",)),
    )(*args)

    return jnp.transpose(y_cl[:N], (0, 2, 1))                           # (N, C_out, L)


# ----------------------------------------------------------------------------
# Pure-JAX reference (mirrors the PyTorch forward) for a sanity check
# ----------------------------------------------------------------------------

def _reference_forward(x, conv1_w, conv1_b, conv2_w, conv2_b, alpha1, alpha2, conv_skip_w=None):
    dn = ("NCH", "OIH", "NCH")

    def conv(v, w, b=None):
        out = jax.lax.conv_general_dilated(v, w, (1,), [(1, 1)], dimension_numbers=dn)
        if b is not None:
            out = out + b[None, :, None]
        return out

    def prelu(h, a):
        return jnp.where(h >= 0, h, a[None, :, None] * h)

    h1 = prelu(conv(x, conv1_w, conv1_b), alpha1)
    h2 = conv(h1, conv2_w, conv2_b)
    skip = conv(x, conv_skip_w) if conv_skip_w is not None else x
    return prelu(h2 + skip, alpha2)


# ----------------------------------------------------------------------------
# Main
# ----------------------------------------------------------------------------

if __name__ == "__main__":
    N, C_IN, C_OUT, L = 2, 4, 8, 16
    key = jax.random.PRNGKey(0)
    k_x, k_w1, k_b1, k_w2, k_b2, k_ws, k_a1, k_a2 = jax.random.split(key, 8)

    x = jax.random.normal(k_x, (N, C_IN, L), dtype=jnp.float32)
    conv1_w = 0.3 * jax.random.normal(k_w1, (C_OUT, C_IN, 3), dtype=jnp.float32)
    conv1_b = 0.1 * jax.random.normal(k_b1, (C_OUT,), dtype=jnp.float32)
    conv2_w = 0.3 * jax.random.normal(k_w2, (C_OUT, C_OUT, 3), dtype=jnp.float32)
    conv2_b = 0.1 * jax.random.normal(k_b2, (C_OUT,), dtype=jnp.float32)
    conv_skip_w = 0.3 * jax.random.normal(k_ws, (C_OUT, C_IN, 3), dtype=jnp.float32)
    # PReLU(init=0.2); small per-channel perturbation so the channel broadcast is exercised.
    alpha1 = 0.2 + 0.05 * jax.random.uniform(k_a1, (C_OUT,), dtype=jnp.float32)
    alpha2 = 0.2 + 0.05 * jax.random.uniform(k_a2, (C_OUT,), dtype=jnp.float32)

    # Skip-conv path (inp_cha != out_cha).
    y = resnet_block_unmasked_forward(x, conv1_w, conv1_b, conv2_w, conv2_b,
                                      alpha1, alpha2, conv_skip_w)
    jax.block_until_ready(y)
    y_ref = _reference_forward(x, conv1_w, conv1_b, conv2_w, conv2_b,
                               alpha1, alpha2, conv_skip_w)
    assert y.shape == (N, C_OUT, L)
    assert jnp.allclose(y, y_ref, atol=1e-4, rtol=1e-4), \
        f"skip-conv path mismatch, max abs err {float(jnp.max(jnp.abs(y - y_ref)))}"

    # Identity-skip path (inp_cha == out_cha, conv_skip = Identity).
    x2 = jax.random.normal(jax.random.PRNGKey(1), (N, C_OUT, L), dtype=jnp.float32)
    conv1b_w = 0.3 * jax.random.normal(jax.random.PRNGKey(2), (C_OUT, C_OUT, 3),
                                       dtype=jnp.float32)
    y2 = resnet_block_unmasked_forward(x2, conv1b_w, conv1_b, conv2_w, conv2_b,
                                       alpha1, alpha2, None)
    jax.block_until_ready(y2)
    y2_ref = _reference_forward(x2, conv1b_w, conv1_b, conv2_w, conv2_b, alpha1, alpha2, None)
    assert jnp.allclose(y2, y2_ref, atol=1e-4, rtol=1e-4), \
        f"identity-skip path mismatch, max abs err {float(jnp.max(jnp.abs(y2 - y2_ref)))}"

    print("KERNEL_OK")
</pallas_src>

<mosaic_0001>
module attributes {stable_mosaic.version = 11 : i64} {
  func.func @_resnet_block_kernel(%arg0: i32, %arg1: memref<2x16x4xf32, #tpu.memory_space<vmem>>, %arg2: memref<12x8xf32, #tpu.memory_space<vmem>>, %arg3: memref<24x8xf32, #tpu.memory_space<vmem>>, %arg4: memref<4x8xf32, #tpu.memory_space<vmem>>, %arg5: memref<12x8xf32, #tpu.memory_space<vmem>>, %arg6: memref<2x16x8xf32, #tpu.memory_space<vmem>>) attributes {dimension_semantics = [#tpu.dimension_semantics<parallel>], iteration_bounds = array<i64: 1>, scalar_prefetch = 0 : i64, scratch_operands = 0 : i64, tpu.core_type = #tpu.core_type<tc>, window_params = [{transform_indices = @transform_0, window_bounds = array<i64: 2, 16, 4>}, {pipeline_mode = #tpu.pipeline_mode<synchronous>, transform_indices = @transform_1, window_bounds = array<i64: 12, 8>}, {pipeline_mode = #tpu.pipeline_mode<synchronous>, transform_indices = @transform_2, window_bounds = array<i64: 24, 8>}, {pipeline_mode = #tpu.pipeline_mode<synchronous>, transform_indices = @transform_3, window_bounds = array<i64: 4, 8>}, {pipeline_mode = #tpu.pipeline_mode<synchronous>, transform_indices = @transform_4, window_bounds = array<i64: 12, 8>}, {transform_indices = @transform_5, window_bounds = array<i64: 2, 16, 8>}]} {
    %c0 = arith.constant 0 : index
    %c0_0 = arith.constant 0 : index
    %c0_1 = arith.constant 0 : index
    %0 = vector.load %arg1[%c0, %c0_0, %c0_1] : memref<2x16x4xf32, #tpu.memory_space<vmem>>, vector<2x16x4xf32>
    %c0_2 = arith.constant 0 : index
    %c0_3 = arith.constant 0 : index
    %1 = vector.load %arg4[%c0_2, %c0_3] : memref<4x8xf32, #tpu.memory_space<vmem>>, vector<4x8xf32>
    %2 = vector.extract_strided_slice %1 {offsets = [0, 0], sizes = [1, 8], strides = [1, 1]} : vector<4x8xf32> to vector<1x8xf32>
    %3 = vector.extract_strided_slice %1 {offsets = [1, 0], sizes = [1, 8], strides = [1, 1]} : vector<4x8xf32> to vector<1x8xf32>
    %4 = vector.extract_strided_slice %1 {offsets = [2, 0], sizes = [1, 8], strides = [1, 1]} : vector<4x8xf32> to vector<1x8xf32>
    %5 = vector.extract_strided_slice %1 {offsets = [3, 0], sizes = [1, 8], strides = [1, 1]} : vector<4x8xf32> to vector<1x8xf32>
    %cst = arith.constant 0.000000e+00 : f32
    %6 = vector.broadcast %cst : f32 to vector<2x1x4xf32>
    %7 = vector.extract_strided_slice %0 {offsets = [0, 0, 0], sizes = [2, 15, 4], strides = [1, 1, 1]} : vector<2x16x4xf32> to vector<2x15x4xf32>
    %8 = tpu.concatenate %6, %7 in 1 : vector<2x1x4xf32>, vector<2x15x4xf32> -> vector<2x16x4xf32>
    %9 = vector.extract_strided_slice %0 {offsets = [0, 1, 0], sizes = [2, 15, 4], strides = [1, 1, 1]} : vector<2x16x4xf32> to vector<2x15x4xf32>
    %10 = tpu.concatenate %9, %6 in 1 : vector<2x15x4xf32>, vector<2x1x4xf32> -> vector<2x16x4xf32>
    %11 = tpu.concatenate %8, %0, %10 in 2 : vector<2x16x4xf32>, vector<2x16x4xf32>, vector<2x16x4xf32> -> vector<2x16x12xf32>
    %c0_4 = arith.constant 0 : index
    %c0_5 = arith.constant 0 : index
    %12 = vector.load %arg2[%c0_4, %c0_5] : memref<12x8xf32, #tpu.memory_space<vmem>>, vector<12x8xf32>
    %13 = vector.shape_cast %11 : vector<2x16x12xf32> to vector<32x12xf32>
    %cst_6 = arith.constant dense<0.000000e+00> : vector<32x8xf32>
    %14 = tpu.matmul %13, %12, %cst_6 {dimension_numbers = #tpu.dot_dimension_numbers<[1], [0], [0], [1], [0, 0, 1, 1], [], []>} : vector<32x12xf32>, vector<12x8xf32>, vector<32x8xf32> -> vector<32x8xf32>
    %15 = vector.shape_cast %14 : vector<32x8xf32> to vector<2x16x8xf32>
    %16 = vector.shape_cast %2 : vector<1x8xf32> to vector<1x1x8xf32>
    %17 = vector.broadcast %16 : vector<1x1x8xf32> to vector<2x16x8xf32>
    %18 = arith.addf %15, %17 : vector<2x16x8xf32>
    %cst_7 = arith.constant 0.000000e+00 : f32
    %19 = vector.broadcast %cst_7 : f32 to vector<2x16x8xf32>
    %20 = arith.cmpf oge, %18, %19 : vector<2x16x8xf32>
    %21 = vector.shape_cast %4 : vector<1x8xf32> to vector<1x1x8xf32>
    %22 = vector.broadcast %21 : vector<1x1x8xf32> to vector<2x16x8xf32>
    %23 = arith.mulf %22, %18 : vector<2x16x8xf32>
    %24 = arith.select %20, %18, %23 : vector<2x16x8xi1>, vector<2x16x8xf32>
    %cst_8 = arith.constant 0.000000e+00 : f32
    %25 = vector.broadcast %cst_8 : f32 to vector<2x1x8xf32>
    %26 = vector.extract_strided_slice %24 {offsets = [0, 0, 0], sizes = [2, 15, 8], strides = [1, 1, 1]} : vector<2x16x8xf32> to vector<2x15x8xf32>
    %27 = tpu.concatenate %25, %26 in 1 : vector<2x1x8xf32>, vector<2x15x8xf32> -> vector<2x16x8xf32>
    %28 = vector.extract_strided_slice %24 {offsets = [0, 1, 0], sizes = [2, 15, 8], strides = [1, 1, 1]} : vector<2x16x8xf32> to vector<2x15x8xf32>
    %29 = tpu.concatenate %28, %25 in 1 : vector<2x15x8xf32>, vector<2x1x8xf32> -> vector<2x16x8xf32>
    %30 = tpu.concatenate %27, %24, %29 in 2 : vector<2x16x8xf32>, vector<2x16x8xf32>, vector<2x16x8xf32> -> vector<2x16x24xf32>
    %c0_9 = arith.constant 0 : index
    %c0_10 = arith.constant 0 : index
    %31 = vector.load %arg3[%c0_9, %c0_10] : memref<24x8xf32, #tpu.memory_space<vmem>>, vector<24x8xf32>
    %32 = vector.shape_cast %30 : vector<2x16x24xf32> to vector<32x24xf32>
    %cst_11 = arith.constant dense<0.000000e+00> : vector<32x8xf32>
    %33 = tpu.matmul %32, %31, %cst_11 {dimension_numbers = #tpu.dot_dimension_numbers<[1], [0], [0], [1], [0, 0, 1, 1], [], []>} : vector<32x24xf32>, vector<24x8xf32>, vector<32x8xf32> -> vector<32x8xf32>
    %34 = vector.shape_cast %33 : vector<32x8xf32> to vector<2x16x8xf32>
    %35 = vector.shape_cast %3 : vector<1x8xf32> to vector<1x1x8xf32>
    %36 = vector.broadcast %35 : vector<1x1x8xf32> to vector<2x16x8xf32>
    %37 = arith.addf %34, %36 : vector<2x16x8xf32>
    %c0_12 = arith.constant 0 : index
    %c0_13 = arith.constant 0 : index
    %38 = vector.load %arg5[%c0_12, %c0_13] : memref<12x8xf32, #tpu.memory_space<vmem>>, vector<12x8xf32>
    %39 = vector.shape_cast %11 : vector<2x16x12xf32> to vector<32x12xf32>
    %cst_14 = arith.constant dense<0.000000e+00> : vector<32x8xf32>
    %40 = tpu.matmul %39, %38, %cst_14 {dimension_numbers = #tpu.dot_dimension_numbers<[1], [0], [0], [1], [0, 0, 1, 1], [], []>} : vector<32x12xf32>, vector<12x8xf32>, vector<32x8xf32> -> vector<32x8xf32>
    %41 = vector.shape_cast %40 : vector<32x8xf32> to vector<2x16x8xf32>
    %42 = arith.addf %37, %41 : vector<2x16x8xf32>
    %cst_15 = arith.constant 0.000000e+00 : f32
    %43 = vector.broadcast %cst_15 : f32 to vector<2x16x8xf32>
    %44 = arith.cmpf oge, %42, %43 : vector<2x16x8xf32>
    %45 = vector.shape_cast %5 : vector<1x8xf32> to vector<1x1x8xf32>
    %46 = vector.broadcast %45 : vector<1x1x8xf32> to vector<2x16x8xf32>
    %47 = arith.mulf %46, %42 : vector<2x16x8xf32>
    %48 = arith.select %44, %42, %47 : vector<2x16x8xi1>, vector<2x16x8xf32>
    %c0_16 = arith.constant 0 : index
    %c0_17 = arith.constant 0 : index
    %c0_18 = arith.constant 0 : index
    %49 = vector.load %arg6[%c0_16, %c0_17, %c0_18] : memref<2x16x8xf32, #tpu.memory_space<vmem>>, vector<2x16x8xf32>
    tpu.vector_store %arg6[%c0_16, %c0_17, %c0_18], %48 {strides = array<i32>} : memref<2x16x8xf32, #tpu.memory_space<vmem>>, vector<2x16x8xf32>,
    return
  }
  func.func @transform_0(%arg0: i32) -> (i32, i32, i32) {
    %c0_i32 = arith.constant 0 : i32
    %c0_i32_0 = arith.constant 0 : i32
    %c0_i32_1 = arith.constant 0 : i32
    return %arg0, %c0_i32, %c0_i32_0 : i32, i32, i32
  }
  func.func @transform_1(%arg0: i32) -> (i32, i32) {
    %c0_i32 = arith.constant 0 : i32
    %c0_i32_0 = arith.constant 0 : i32
    %c0_i32_1 = arith.constant 0 : i32
    return %c0_i32, %c0_i32_0 : i32, i32
  }
  func.func @transform_2(%arg0: i32) -> (i32, i32) {
    %c0_i32 = arith.constant 0 : i32
    %c0_i32_0 = arith.constant 0 : i32
    %c0_i32_1 = arith.constant 0 : i32
    return %c0_i32, %c0_i32_0 : i32, i32
  }
  func.func @transform_3(%arg0: i32) -> (i32, i32) {
    %c0_i32 = arith.constant 0 : i32
    %c0_i32_0 = arith.constant 0 : i32
    %c0_i32_1 = arith.constant 0 : i32
    return %c0_i32, %c0_i32_0 : i32, i32
  }
  func.func @transform_4(%arg0: i32) -> (i32, i32) {
    %c0_i32 = arith.constant 0 : i32
    %c0_i32_0 = arith.constant 0 : i32
    %c0_i32_1 = arith.constant 0 : i32
    return %c0_i32, %c0_i32_0 : i32, i32
  }
  func.func @transform_5(%arg0: i32) -> (i32, i32, i32) {
    %c0_i32 = arith.constant 0 : i32
    %c0_i32_0 = arith.constant 0 : i32
    %c0_i32_1 = arith.constant 0 : i32
    return %arg0, %c0_i32, %c0_i32_0 : i32, i32, i32
  }
}

</mosaic_0001>

<llo_original>
// kernel: tpu_custom_call.1
$region0: #{tpu_custom_call.1}
  #allocation0 [shape = 'u32[]', space=smem, size = 0x4, offset = 0x4, fixed_abs, tag = 'smem constant byte address 0x4 - core index']
  #allocation1 [shape = 'u32[72,128]{1,0:T(1,128)}', space=vmem, size = 0x9000, scoped, tag = 'internal scratch']
  %s0 = inlined_call_operand.vmem [shape: f32[2,16,4], index: 0, kind: input, shape index: {}]
  %s1 = inlined_call_operand.vmem [shape: f32[12,8], index: 1, kind: input, shape index: {}]
  %s2 = inlined_call_operand.vmem [shape: f32[24,8], index: 2, kind: input, shape index: {}]
  %s3 = inlined_call_operand.vmem [shape: f32[4,8], index: 3, kind: input, shape index: {}]
  %s4 = inlined_call_operand.vmem [shape: f32[12,8], index: 4, kind: input, shape index: {}]
  %s5 = inlined_call_operand.vmem [shape: f32[2,16,8], index: 5, kind: output, shape index: {}]
  %s6 = sld [smem:[#allocation0]]
  $region30: #{tpu_custom_call.1} parent=0
    _
  %s8 = ssub.s32 1, %s6
  %s9 = scalar_select 0, %s8, %s6
  // Predicated region
  $region2: #{tpu_custom_call.1} parent=0 // pred_check
    _
  $region3: #{tpu_custom_call.1} parent=0 // pred_check_branch
    %11 = sbr.rel (0) target = $region5
  $region4: #{tpu_custom_call.1} parent=0 // pred_region
    _
  $region5: #{tpu_custom_call.1} parent=0 // pred_fallthru
    _
  // Predicated region
  $region6: #{tpu_custom_call.1} parent=0 // pred_check
    _
  $region7: #{tpu_custom_call.1} parent=0 // pred_check_branch
    %13 = sbr.rel (0) target = $region9
  $region8: #{tpu_custom_call.1} parent=0 // pred_region
    _
  $region9: #{tpu_custom_call.1} parent=0 // pred_fallthru
    _
  // Predicated region
  $region10: #{tpu_custom_call.1} parent=0 // pred_check
    _
  $region11: #{tpu_custom_call.1} parent=0 // pred_check_branch
    %15 = sbr.rel (0) target = $region13
  $region12: #{tpu_custom_call.1} parent=0 // pred_region
    _
  $region13: #{tpu_custom_call.1} parent=0 // pred_fallthru
    _
  // Predicated region
  $region14: #{tpu_custom_call.1} parent=0 // pred_check
    _
  $region15: #{tpu_custom_call.1} parent=0 // pred_check_branch
    %17 = sbr.rel (0) target = $region17
  $region16: #{tpu_custom_call.1} parent=0 // pred_region
    _
  $region17: #{tpu_custom_call.1} parent=0 // pred_fallthru
    _
  // Predicated region
  $region18: #{tpu_custom_call.1} parent=0 // pred_check
    _
  $region19: #{tpu_custom_call.1} parent=0 // pred_check_branch
    %19 = sbr.rel (0) target = $region21
  $region20: #{tpu_custom_call.1} parent=0 // pred_region
    _
  $region21: #{tpu_custom_call.1} parent=0 // pred_fallthru
    _
  %v20 = vld [vmem:[%s0] sm:$0xff]
  %v21 = vld [vmem:[%s0 + $0x8] sm:$0xff]
  %v22 = vld [vmem:[%s0 + $0x10] sm:$0xff]
  %v23 = vld [vmem:[%s0 + $0x18] sm:$0xff]
  %v24 = vld [vmem:[%s3] sm:$0xf]
  %vm29 = vcmask 1040384
  %v30 = vrot.slane %v20, 7
  %v31 = vrot.slane %v21, 7
  %v32 = vsel %vm29, %v30, %v31
  %v33 = vrot.slane %v22, 7
  %v34 = vrot.slane %v23, 7
  %v35 = vsel %vm29, %v33, %v34
  %v40 = vsel %vm29, 0.0, %v30
  %v41 = vsel %vm29, 0.0, %v33
  %vm42 = vcmask 1046528
  %v43 = vrot.slane %v20, 1
  %v44 = vrot.slane %v21, 1
  %v45 = vsel %vm42, %v43, %v44
  %v46 = vrot.slane %v22, 1
  %v47 = vrot.slane %v23, 1
  %v48 = vsel %vm42, %v46, %v47
  %v51 = vsel %vm42, %v44, 0.0
  %v52 = vsel %vm42, %v47, 0.0
  %53 = vrot.lane.b32.xlu0 %v20, 4
  %v54 = vpop.permute.xlu0 %53
  %55 = vrot.lane.b32.xlu0 %v21, 4
  %v56 = vpop.permute.xlu0 %55
  %57 = vrot.lane.b32.xlu0 %v22, 4
  %v58 = vpop.permute.xlu0 %57
  %59 = vrot.lane.b32.xlu0 %v23, 4
  %v60 = vpop.permute.xlu0 %59
  %67 = vrot.lane.b32.xlu0 %v45, 8
  %v68 = vpop.permute.xlu0 %67
  %69 = vrot.lane.b32.xlu0 %v51, 8
  %v70 = vpop.permute.xlu0 %69
  %71 = vrot.lane.b32.xlu0 %v48, 8
  %v72 = vpop.permute.xlu0 %71
  %73 = vrot.lane.b32.xlu0 %v52, 8
  %v74 = vpop.permute.xlu0 %73
  %vm79 = vcmask 31744
  %v80 = vsel %vm79, %v40, %v54
  %v81 = vsel %vm79, %v32, %v56
  %v82 = vsel %vm79, %v41, %v58
  %v83 = vsel %vm79, %v35, %v60
  %vm84 = vcmask 64512
  %v85 = vsel %vm84, %v80, %v68
  %v86 = vsel %vm84, %v81, %v70
  %v87 = vsel %vm84, %v82, %v72
  %v88 = vsel %vm84, %v83, %v74
  %v89 = vld [vmem:[%s1] sm:$0xff]
  %v90 = vld [vmem:[%s1 + $0x8] sm:$0xf]
  %vm91 = vcmask 97280
  %v93 = vsel %vm91, %v85, 0
  %v96 = vsel %vm91, %v86, 0
  %v99 = vsel %vm91, %v87, 0
  %v102 = vsel %vm91, %v88, 0
  %vm104 = vcmask 1043456
  %v106 = vsel %vm104, %v90, 0
  %108 = vmatpush.msra.mxu0 0.0
  %109 = vmatpush.msra.mxu0 0.0
  %110 = vmatpush.msra.mxu0 0.0
  %111 = vmatpush.msra.mxu0 0.0
  %112 = vmatpush.msra.mxu0 0.0
  %113 = vmatpush.msra.mxu0 0.0
  %114 = vmatpush.msra.mxu0 0.0
  %115 = vmatpush.msra.mxu0 0.0
  %116 = vmatpush.msra.mxu0 0.0
  %117 = vmatpush.msra.mxu0 0.0
  %118 = vmatpush.msra.mxu0 0.0
  %119 = vmatpush.msra.mxu0 0.0
  %120 = vmatpush.msra.mxu0 0.0
  %121 = vmatpush.msra.mxu0 0.0
  %122 = vmatpush.msra.mxu0 %v106
  %123 = vmatpush.msra.mxu0 %v89
  %124 = vmatmul.f32.gmra.mxu0 %v93
  %v125 = vpop.f32.mrf.mxu0
  %v126 = vadd.f32 0.0, %v125
  %127 = vmatmul.f32.gmra.mxu0 %v96
  %v128 = vpop.f32.mrf.mxu0
  %v129 = vadd.f32 0.0, %v128
  %130 = vmatmul.f32.gmra.mxu0 %v99
  %v131 = vpop.f32.mrf.mxu0
  %v132 = vadd.f32 0.0, %v131
  %133 = vmatmul.f32.gmra.mxu0 %v102
  %v134 = vpop.f32.mrf.mxu0
  %v135 = vadd.f32 0.0, %v134
  %136 = vdwg.mxu0
  %v137 = vperm.slane %v24, 0
  %v138 = vadd.f32 %v126, %v137
  %v139 = vadd.f32 %v129, %v137
  %v140 = vadd.f32 %v132, %v137
  %v141 = vadd.f32 %v135, %v137
  %vm142 = vcmp.ge.f32.partialorder %v138, 0.0
  %vm143 = vcmp.ge.f32.partialorder %v139, 0.0
  %vm144 = vcmp.ge.f32.partialorder %v140, 0.0
  %vm145 = vcmp.ge.f32.partialorder %v141, 0.0
  %v146 = vperm.slane %v24, 2
  %v147 = vmul.f32 %v146, %v138
  %v148 = vmul.f32 %v146, %v139
  %v149 = vmul.f32 %v146, %v140
  %v150 = vmul.f32 %v146, %v141
  %v151 = vsel %vm142, %v138, %v147
  %v152 = vsel %vm143, %v139, %v148
  %v153 = vsel %vm144, %v140, %v149
  %v154 = vsel %vm145, %v141, %v150
  %v159 = vrot.slane %v151, 7
  %v160 = vrot.slane %v152, 7
  %v161 = vsel %vm29, %v159, %v160
  %v162 = vrot.slane %v153, 7
  %v163 = vrot.slane %v154, 7
  %v164 = vsel %vm29, %v162, %v163
  %v169 = vsel %vm29, 0.0, %v159
  %v170 = vsel %vm29, 0.0, %v162
  %v171 = vrot.slane %v151, 1
  %v172 = vrot.slane %v152, 1
  %v173 = vsel %vm42, %v171, %v172
  %v174 = vrot.slane %v153, 1
  %v175 = vrot.slane %v154, 1
  %v176 = vsel %vm42, %v174, %v175
  %v179 = vsel %vm42, %v172, 0.0
  %v180 = vsel %vm42, %v175, 0.0
  %181 = vrot.lane.b32.xlu0 %v151, 8
  %v182 = vpop.permute.xlu0 %181
  %183 = vrot.lane.b32.xlu0 %v152, 8
  %v184 = vpop.permute.xlu0 %183
  %185 = vrot.lane.b32.xlu0 %v153, 8
  %v186 = vpop.permute.xlu0 %185
  %187 = vrot.lane.b32.xlu0 %v154, 8
  %v188 = vpop.permute.xlu0 %187
  %195 = vrot.lane.b32.xlu0 %v173, 16
  %v196 = vpop.permute.xlu0 %195
  %197 = vrot.lane.b32.xlu0 %v179, 16
  %v198 = vpop.permute.xlu0 %197
  %199 = vrot.lane.b32.xlu0 %v176, 16
  %v200 = vpop.permute.xlu0 %199
  %201 = vrot.lane.b32.xlu0 %v180, 16
  %v202 = vpop.permute.xlu0 %201
  %v207 = vsel %vm84, %v169, %v182
  %v208 = vsel %vm84, %v161, %v184
  %v209 = vsel %vm84, %v170, %v186
  %v210 = vsel %vm84, %v164, %v188
  %vm211 = vcmask 130048
  %v212 = vsel %vm211, %v207, %v196
  %v213 = vsel %vm211, %v208, %v198
  %v214 = vsel %vm211, %v209, %v200
  %v215 = vsel %vm211, %v210, %v202
  %v216 = vld [vmem:[%s2] sm:$0xff]
  %v217 = vld [vmem:[%s2 + $0x8] sm:$0xff]
  %v218 = vld [vmem:[%s2 + $0x10] sm:$0xff]
  %vm219 = vcmask 195584
  %v221 = vsel %vm219, %v212, 0
  %v224 = vsel %vm219, %v213, 0
  %v227 = vsel %vm219, %v214, 0
  %v230 = vsel %vm219, %v215, 0
  %232 = vmatpush.msra.mxu0 0.0
  %233 = vmatpush.msra.mxu0 0.0
  %234 = vmatpush.msra.mxu0 0.0
  %235 = vmatpush.msra.mxu0 0.0
  %236 = vmatpush.msra.mxu0 0.0
  %237 = vmatpush.msra.mxu0 0.0
  %238 = vmatpush.msra.mxu0 0.0
  %239 = vmatpush.msra.mxu0 0.0
  %240 = vmatpush.msra.mxu0 0.0
  %241 = vmatpush.msra.mxu0 0.0
  %242 = vmatpush.msra.mxu0 0.0
  %243 = vmatpush.msra.mxu0 0.0
  %244 = vmatpush.msra.mxu0 0.0
  %245 = vmatpush.msra.mxu0 %v218
  %246 = vmatpush.msra.mxu0 %v217
  %247 = vmatpush.msra.mxu0 %v216
  %248 = vmatmul.f32.gmra.mxu0 %v221
  %v249 = vpop.f32.mrf.mxu0
  %v250 = vadd.f32 0.0, %v249
  %251 = vmatmul.f32.gmra.mxu0 %v224
  %v252 = vpop.f32.mrf.mxu0
  %v253 = vadd.f32 0.0, %v252
  %254 = vmatmul.f32.gmra.mxu0 %v227
  %v255 = vpop.f32.mrf.mxu0
  %v256 = vadd.f32 0.0, %v255
  %257 = vmatmul.f32.gmra.mxu0 %v230
  %v258 = vpop.f32.mrf.mxu0
  %v259 = vadd.f32 0.0, %v258
  %260 = vdwg.mxu0
  %v261 = vperm.slane %v24, 1
  %v262 = vadd.f32 %v250, %v261
  %v263 = vadd.f32 %v253, %v261
  %v264 = vadd.f32 %v256, %v261
  %v265 = vadd.f32 %v259, %v261
  %v266 = vld [vmem:[%s4] sm:$0xff]
  %v267 = vld [vmem:[%s4 + $0x8] sm:$0xf]
  %v269 = vsel %vm104, %v267, 0
  %271 = vmatpush.msra.mxu0 0.0
  %272 = vmatpush.msra.mxu0 0.0
  %273 = vmatpush.msra.mxu0 0.0
  %274 = vmatpush.msra.mxu0 0.0
  %275 = vmatpush.msra.mxu0 0.0
  %276 = vmatpush.msra.mxu0 0.0
  %277 = vmatpush.msra.mxu0 0.0
  %278 = vmatpush.msra.mxu0 0.0
  %279 = vmatpush.msra.mxu0 0.0
  %280 = vmatpush.msra.mxu0 0.0
  %281 = vmatpush.msra.mxu0 0.0
  %282 = vmatpush.msra.mxu0 0.0
  %283 = vmatpush.msra.mxu0 0.0
  %284 = vmatpush.msra.mxu0 0.0
  %285 = vmatpush.msra.mxu0 %v269
  %286 = vmatpush.msra.mxu0 %v266
  %287 = vmatmul.f32.gmra.mxu0 %v93
  %v288 = vpop.f32.mrf.mxu0
  %v289 = vadd.f32 0.0, %v288
  %290 = vmatmul.f32.gmra.mxu0 %v96
  %v291 = vpop.f32.mrf.mxu0
  %v292 = vadd.f32 0.0, %v291
  %293 = vmatmul.f32.gmra.mxu0 %v99
  %v294 = vpop.f32.mrf.mxu0
  %v295 = vadd.f32 0.0, %v294
  %296 = vmatmul.f32.gmra.mxu0 %v102
  %v297 = vpop.f32.mrf.mxu0
  %v298 = vadd.f32 0.0, %v297
  %299 = vdwg.mxu0
  %v300 = vadd.f32 %v262, %v289
  %v301 = vadd.f32 %v263, %v292
  %v302 = vadd.f32 %v264, %v295
  %v303 = vadd.f32 %v265, %v298
  %vm304 = vcmp.ge.f32.partialorder %v300, 0.0
  %vm305 = vcmp.ge.f32.partialorder %v301, 0.0
  %vm306 = vcmp.ge.f32.partialorder %v302, 0.0
  %vm307 = vcmp.ge.f32.partialorder %v303, 0.0
  %v308 = vperm.slane %v24, 3
  %v309 = vmul.f32 %v308, %v300
  %v310 = vmul.f32 %v308, %v301
  %v311 = vmul.f32 %v308, %v302
  %v312 = vmul.f32 %v308, %v303
  %v313 = vsel %vm304, %v300, %v309
  %v314 = vsel %vm305, %v301, %v310
  %v315 = vsel %vm306, %v302, %v311
  %v316 = vsel %vm307, %v303, %v312
  %317 = vst.msk [vmem:[%s5] sm:$0xff] %vm84, %v313
  %318 = vst.msk [vmem:[%s5 + $0x8] sm:$0xff] %vm84, %v314
  %319 = vst.msk [vmem:[%s5 + $0x10] sm:$0xff] %vm84, %v315
  %320 = vst.msk [vmem:[%s5 + $0x18] sm:$0xff] %vm84, %v316
  // Predicated region
  $region22: #{tpu_custom_call.1} parent=0 // pred_check
    _
  $region23: #{tpu_custom_call.1} parent=0 // pred_check_branch
    %322 = sbr.rel (0) target = $region25
  $region24: #{tpu_custom_call.1} parent=0 // pred_region
    _
  $region25: #{tpu_custom_call.1} parent=0 // pred_fallthru
    _
  // Predicated region
  $region26: #{tpu_custom_call.1} parent=0 // pred_check
    _
  $region27: #{tpu_custom_call.1} parent=0 // pred_check_branch
    %324 = sbr.rel (0) target = $region29
  $region28: #{tpu_custom_call.1} parent=0 // pred_region
    _
  $region29: #{tpu_custom_call.1} parent=0 // pred_fallthru
    _

</llo_original>
